<compile_context>
chip_gen: v7x
topology: tpu7x:2x2x1
jax: 0.10.0
libtpu: 0.0.40
codegen_flags: <defaults>
</compile_context>

<pallas_src>
import jax
import jax.numpy as jnp
from jax.experimental import pallas as pl
from jax.experimental.pallas import tpu as pltpu


# ----------------------------------------------------------------------------
# Trivial ops: leave to XLA (perf feedback: pallas_call only adds overhead here)
# ----------------------------------------------------------------------------
def make_init_att(context):
    # context.data.new(B, D).zero_() — a pure memset; XLA fuses it into consumers.
    B, _, D = context.shape
    return jnp.zeros((B, D), dtype=context.dtype)


def sequence_mask(context_lengths, max_len):
    # sequence_mask(lengths, T).unsqueeze(1) -> (B, 1, T) bool; an iota-compare
    # that XLA fuses into whatever attention kernel consumes the mask.
    pos = jnp.arange(max_len, dtype=jnp.int32)[None, :]
    return (pos < context_lengths.astype(jnp.int32)[:, None])[:, None, :]


# ----------------------------------------------------------------------------
# Kernel 1: greedy-decode per-step hot path on precomputed logits
#   logp = log_softmax(logit, -1); maxv, maxidx = max(logp, -1)
#   Fused single pass: maxv == -lse, argmax(logp) == argmax(logit).
# ----------------------------------------------------------------------------
def _greedy_step_kernel(logit_ref, logp_ref, maxv_ref, maxidx_ref):
    x = logit_ref[...].astype(jnp.float32)                       # (tb, V)
    m = jnp.max(x, axis=-1, keepdims=True)                       # one XLU reduce
    lse = jnp.log(jnp.sum(jnp.exp(x - m), axis=-1, keepdims=True))
    logp_ref[...] = (x - m - lse).astype(logp_ref.dtype)         # input dtype out
    # max over log_softmax(x) == -lse (since max(x) - m == 0): no 2nd reduce pass
    maxv_ref[...] = (-lse).astype(maxv_ref.dtype)
    # argmax(log_softmax(x)) == argmax(x): first index attaining the raw max
    tb, v = x.shape
    col = jax.lax.broadcasted_iota(jnp.int32, (tb, v), 1)
    maxidx_ref[...] = jnp.min(jnp.where(x == m, col, v), axis=-1, keepdims=True)


def _greedy_batch_tile(B, V, itemsize):
    if B <= 8:
        return B                                   # full extent along batch
    # ~2 MiB per block (logit in + logp out) keeps the double-buffered working
    # set well under scoped-VMEM defaults on v5e/v6e (32 MiB) and v7x (64 MiB phys).
    budget = 2 * 1024 * 1024
    rows = budget // max(1, V * 2 * itemsize)
    rows = max(8, min(B, rows))
    return (rows // 8) * 8


def greedy_logsoftmax_argmax(logit):
    """logp = log_softmax(logit,-1); maxv, maxidx = max(logp,-1). One fused pass.

    maxv is returned in float32 for accuracy (cast at call-site if needed).
    """
    B, V = logit.shape
    tb = _greedy_batch_tile(B, V, jnp.dtype(logit.dtype).itemsize)
    grid = (pl.cdiv(B, tb),)
    logp, maxv, maxidx = pl.pallas_call(
        _greedy_step_kernel,
        grid=grid,
        out_shape=(
            jax.ShapeDtypeStruct((B, V), logit.dtype),   # logp in input dtype
            jax.ShapeDtypeStruct((B, 1), jnp.float32),
            jax.ShapeDtypeStruct((B, 1), jnp.int32),
        ),
        in_specs=[pl.BlockSpec((tb, V), lambda i: (i, 0))],
        out_specs=(
            pl.BlockSpec((tb, V), lambda i: (i, 0)),
            # last-dim-1 outputs lower to masked stores; negligible at these sizes
            pl.BlockSpec((tb, 1), lambda i: (i, 0)),
            pl.BlockSpec((tb, 1), lambda i: (i, 0)),
        ),
        compiler_params=pltpu.CompilerParams(
            dimension_semantics=("parallel",)),
    )(logit)
    return logp, maxv[:, 0], maxidx[:, 0]


# ----------------------------------------------------------------------------
# Kernel 2 (structural win): fused hidden->vocab projection + greedy epilogue.
#   logit = h @ w ; maxv = max(log_softmax(logit,-1),-1) ; maxidx = argmax(logit,-1)
# Online max / LSE / argmax across vocab tiles -> the (B, V) logits never make a
# second HBM round trip between the projection and the softmax epilogue.
# ----------------------------------------------------------------------------
def _fused_project_greedy_kernel(h_ref, w_ref, logit_ref, maxv_ref, maxidx_ref,
                                 acc_ref, m_ref, l_ref, idx_ref):
    j = pl.program_id(1)                       # vocab tile
    k = pl.program_id(2)                       # hidden (contraction) tile
    nj = pl.num_programs(1)
    nk = pl.num_programs(2)

    @pl.when(jnp.logical_and(j == 0, k == 0))
    def _init_online_state():
        m_ref[...] = jnp.full(m_ref.shape, -jnp.inf, dtype=jnp.float32)
        l_ref[...] = jnp.zeros_like(l_ref)
        idx_ref[...] = jnp.zeros_like(idx_ref)

    @pl.when(k == 0)
    def _init_acc():
        acc_ref[...] = jnp.zeros_like(acc_ref)

    acc_ref[...] += jnp.dot(h_ref[...], w_ref[...],
                            preferred_element_type=jnp.float32)

    @pl.when(k == nk - 1)
    def _epilogue():
        s = acc_ref[...]                                    # (tb, tv) f32 logits
        logit_ref[...] = s.astype(logit_ref.dtype)
        tb, tv = s.shape
        col = j * tv + jax.lax.broadcasted_iota(jnp.int32, (tb, tv), 1)
        t_m = jnp.max(s, axis=-1, keepdims=True)
        t_idx = jnp.min(jnp.where(s == t_m, col, j * tv + tv),
                        axis=-1, keepdims=True)
        m_prev = m_ref[...]
        m_new = jnp.maximum(m_prev, t_m)
        l_ref[...] = (l_ref[...] * jnp.exp(m_prev - m_new)
                      + jnp.sum(jnp.exp(s - m_new), axis=-1, keepdims=True))
        # strict '>' keeps the earliest-occurring maximum (torch tie-break)
        idx_ref[...] = jnp.where(t_m > m_prev, t_idx, idx_ref[...])
        m_ref[...] = m_new

        @pl.when(j == nj - 1)
        def _finalize():
            # max(log_softmax(x)) = -log(sum exp(x - max))
            maxv_ref[...] = (-jnp.log(l_ref[...])).astype(maxv_ref.dtype)
            maxidx_ref[...] = idx_ref[...]


def project_logsoftmax_argmax(h, w, *, tb=128, tv=512, tk=512):
    """Fused vocab projection + greedy log_softmax epilogue (see module docstring)."""
    B, Dh = h.shape
    Dh2, V = w.shape
    assert Dh == Dh2, "h / w contraction dims mismatch"

    # batch tile: full extent, or a multiple of 8 (padded tail rows are discarded)
    tb = B if B <= tb else max(8, (tb // 8) * 8)
    # vocab / hidden tiles must divide exactly: padded garbage columns (V) or
    # padded contraction elements (Dh) would corrupt real rows -> fall back to
    # the full extent when they don't.
    if V <= tv or V % tv != 0 or tv % 128 != 0:
        tv = V
    if Dh <= tk or Dh % tk != 0 or tk % 128 != 0:
        tk = Dh

    grid = (pl.cdiv(B, tb), V // tv, Dh // tk)
    logit, maxv, maxidx = pl.pallas_call(
        _fused_project_greedy_kernel,
        out_shape=(
            jax.ShapeDtypeStruct((B, V), h.dtype),
            jax.ShapeDtypeStruct((B, 1), jnp.float32),
            jax.ShapeDtypeStruct((B, 1), jnp.int32),
        ),
        grid_spec=pltpu.PrefetchScalarGridSpec(
            num_scalar_prefetch=0,
            grid=grid,
            in_specs=[
                pl.BlockSpec((tb, tk), lambda i, j, k: (i, k)),
                pl.BlockSpec((tk, tv), lambda i, j, k: (k, j)),
            ],
            out_specs=(
                pl.BlockSpec((tb, tv), lambda i, j, k: (i, j)),
                pl.BlockSpec((tb, 1), lambda i, j, k: (i, 0)),
                pl.BlockSpec((tb, 1), lambda i, j, k: (i, 0)),
            ),
            scratch_shapes=[
                pltpu.VMEM((tb, tv), jnp.float32),   # matmul accumulator
                pltpu.VMEM((tb, 1), jnp.float32),    # running max (m)
                pltpu.VMEM((tb, 1), jnp.float32),    # running sum-exp (l)
                pltpu.VMEM((tb, 1), jnp.int32),      # running argmax
            ],
        ),
        compiler_params=pltpu.CompilerParams(
            dimension_semantics=("parallel", "arbitrary", "arbitrary")),
    )(h, w)
    return logit, maxv[:, 0], maxidx[:, 0]


# TODO(synk): Decoder.forward raises NotImplementedError and step()/embedding are
# abstract (subclass-provided), so the greedy_decode while-loop with its
# data-dependent EOS break, beam_search() and sample() cannot be implemented here.


if __name__ == "__main__":
    key = jax.random.PRNGKey(0)
    k1, k2, k3, k4 = jax.random.split(key, 4)

    # ---- module-level shapes -------------------------------------------------
    B, T, D, V = 2, 8, 32, 16
    context = jax.random.normal(k1, (B, T, D), dtype=jnp.float32)
    context_lengths = jnp.array([5, 8], dtype=jnp.int32)
    logit = jax.random.normal(k2, (B, V), dtype=jnp.float32)

    init_att = jax.block_until_ready(make_init_att(context))
    mask = jax.block_until_ready(sequence_mask(context_lengths, T))
    logp, maxv, maxidx = jax.block_until_ready(greedy_logsoftmax_argmax(logit))

    assert init_att.shape == (B, D) and bool(jnp.all(init_att == 0))
    ref_mask = (jnp.arange(T)[None, :] < context_lengths[:, None])[:, None, :]
    assert bool(jnp.all(mask == ref_mask))
    ref_logp = jax.nn.log_softmax(logit, axis=-1)
    assert bool(jnp.allclose(logp, ref_logp, atol=1e-5))
    assert bool(jnp.allclose(maxv, jnp.max(ref_logp, axis=-1), atol=1e-5))
    assert bool(jnp.all(maxidx == jnp.argmax(logit, axis=-1)))

    # ---- fused projection + greedy epilogue (multi-tile grid, bf16 I/O) ------
    Bf, Dh, Vf = 8, 256, 512
    h = jax.random.normal(k3, (Bf, Dh), dtype=jnp.float32).astype(jnp.bfloat16)
    w = (0.05 * jax.random.normal(k4, (Dh, Vf), dtype=jnp.float32)).astype(jnp.bfloat16)
    logit_f, maxv_f, maxidx_f = jax.block_until_ready(
        project_logsoftmax_argmax(h, w, tb=8, tv=128, tk=128))

    ref_logit = jnp.dot(h, w, preferred_element_type=jnp.float32)
    ref_logp_f = jax.nn.log_softmax(ref_logit, axis=-1)
    assert bool(jnp.allclose(logit_f.astype(jnp.float32), ref_logit,
                             atol=3e-2, rtol=3e-2))
    assert bool(jnp.allclose(maxv_f, jnp.max(ref_logp_f, axis=-1),
                             atol=3e-2, rtol=3e-2))
    # robust to near-ties: the chosen index must attain (numerically) the row max
    sel = jnp.take_along_axis(ref_logit, maxidx_f[:, None], axis=-1)[:, 0]
    assert bool(jnp.all(sel >= jnp.max(ref_logit, axis=-1) - 1e-2))

    print("KERNEL_OK")
</pallas_src>

<mosaic_0001>
module attributes {stable_mosaic.version = 11 : i64} {
  func.func @_greedy_step_kernel(%arg0: i32, %arg1: memref<2x16xf32, #tpu.memory_space<vmem>>, %arg2: memref<2x16xf32, #tpu.memory_space<vmem>>, %arg3: memref<2x1xf32, #tpu.memory_space<vmem>>, %arg4: memref<2x1xi32, #tpu.memory_space<vmem>>) attributes {dimension_semantics = [#tpu.dimension_semantics<parallel>], iteration_bounds = array<i64: 1>, scalar_prefetch = 0 : i64, scratch_operands = 0 : i64, tpu.core_type = #tpu.core_type<tc>, window_params = [{transform_indices = @transform_0, window_bounds = array<i64: 2, 16>}, {transform_indices = @transform_1, window_bounds = array<i64: 2, 16>}, {transform_indices = @transform_2, window_bounds = array<i64: 2, 1>}, {transform_indices = @transform_3, window_bounds = array<i64: 2, 1>}]} {
    %c0 = arith.constant 0 : index
    %c0_0 = arith.constant 0 : index
    %0 = vector.load %arg1[%c0, %c0_0] : memref<2x16xf32, #tpu.memory_space<vmem>>, vector<2x16xf32>
    %cst = arith.constant dense<0xFF800000> : vector<2xf32>
    %1 = vector.multi_reduction <maximumf>, %0, %cst [1] : vector<2x16xf32> to vector<2xf32>
    %2 = vector.shape_cast %1 : vector<2xf32> to vector<2x1xf32>
    %3 = vector.broadcast %2 : vector<2x1xf32> to vector<2x16xf32>
    %4 = arith.subf %0, %3 : vector<2x16xf32>
    %5 = math.exp %4 : vector<2x16xf32>
    %cst_1 = arith.constant dense<0.000000e+00> : vector<2xf32>
    %6 = vector.multi_reduction <add>, %5, %cst_1 [1] : vector<2x16xf32> to vector<2xf32>
    %7 = vector.shape_cast %6 : vector<2xf32> to vector<2x1xf32>
    %8 = math.log %7 : vector<2x1xf32>
    %9 = vector.broadcast %2 : vector<2x1xf32> to vector<2x16xf32>
    %10 = arith.subf %0, %9 : vector<2x16xf32>
    %11 = vector.broadcast %8 : vector<2x1xf32> to vector<2x16xf32>
    %12 = arith.subf %10, %11 : vector<2x16xf32>
    %c0_2 = arith.constant 0 : index
    %c0_3 = arith.constant 0 : index
    %13 = vector.load %arg2[%c0_2, %c0_3] : memref<2x16xf32, #tpu.memory_space<vmem>>, vector<2x16xf32>
    tpu.vector_store %arg2[%c0_2, %c0_3], %12 {strides = array<i32>} : memref<2x16xf32, #tpu.memory_space<vmem>>, vector<2x16xf32>,
    %cst_4 = arith.constant 0.000000e+00 : f32
    %14 = vector.broadcast %cst_4 : f32 to vector<2x1xf32>
    %15 = arith.subf %14, %8 : vector<2x1xf32>
    %c0_5 = arith.constant 0 : index
    %c0_6 = arith.constant 0 : index
    %16 = vector.load %arg3[%c0_5, %c0_6] : memref<2x1xf32, #tpu.memory_space<vmem>>, vector<2x1xf32>
    tpu.vector_store %arg3[%c0_5, %c0_6], %15 {strides = array<i32>} : memref<2x1xf32, #tpu.memory_space<vmem>>, vector<2x1xf32>,
    %17 = tpu.iota {dimensions = array<i32: 1>} : vector<2x16xi32>
    %18 = vector.broadcast %2 : vector<2x1xf32> to vector<2x16xf32>
    %19 = arith.cmpf oeq, %0, %18 : vector<2x16xf32>
    %c16_i32 = arith.constant 16 : i32
    %20 = vector.broadcast %c16_i32 : i32 to vector<2x16xi32>
    %21 = arith.select %19, %17, %20 : vector<2x16xi1>, vector<2x16xi32>
    %cst_7 = arith.constant dense<2147483647> : vector<2xi32>
    %22 = vector.multi_reduction <minsi>, %21, %cst_7 [1] : vector<2x16xi32> to vector<2xi32>
    %23 = vector.shape_cast %22 : vector<2xi32> to vector<2x1xi32>
    %c0_8 = arith.constant 0 : index
    %c0_9 = arith.constant 0 : index
    %24 = vector.load %arg4[%c0_8, %c0_9] : memref<2x1xi32, #tpu.memory_space<vmem>>, vector<2x1xi32>
    tpu.vector_store %arg4[%c0_8, %c0_9], %23 {strides = array<i32>} : memref<2x1xi32, #tpu.memory_space<vmem>>, vector<2x1xi32>,
    return
  }
  func.func @transform_0(%arg0: i32) -> (i32, i32) {
    %c0_i32 = arith.constant 0 : i32
    %c0_i32_0 = arith.constant 0 : i32
    return %arg0, %c0_i32 : i32, i32
  }
  func.func @transform_1(%arg0: i32) -> (i32, i32) {
    %c0_i32 = arith.constant 0 : i32
    %c0_i32_0 = arith.constant 0 : i32
    return %arg0, %c0_i32 : i32, i32
  }
  func.func @transform_2(%arg0: i32) -> (i32, i32) {
    %c0_i32 = arith.constant 0 : i32
    %c0_i32_0 = arith.constant 0 : i32
    return %arg0, %c0_i32 : i32, i32
  }
  func.func @transform_3(%arg0: i32) -> (i32, i32) {
    %c0_i32 = arith.constant 0 : i32
    %c0_i32_0 = arith.constant 0 : i32
    return %arg0, %c0_i32 : i32, i32
  }
}

</mosaic_0001>

<llo_original>
// kernel: tpu_custom_call.1
$region0: #{tpu_custom_call.1}
  #allocation0 [shape = 'u32[]', space=smem, size = 0x4, offset = 0x4, fixed_abs, tag = 'smem constant byte address 0x4 - core index']
  #allocation1 [shape = 'u32[144,128]{1,0:T(1,128)}', space=vmem, size = 0x12000, scoped, tag = 'internal scratch']
  %s0 = inlined_call_operand.hbm [shape: f32[2,16], index: 0, kind: input, shape index: {}]
  %s1 = inlined_call_operand.hbm [shape: f32[2,16], index: 1, kind: output, shape index: {0}]
  %s2 = inlined_call_operand.vmem [shape: f32[2,1], index: 2, kind: output, shape index: {1}]
  %s3 = inlined_call_operand.vmem [shape: s32[2,1], index: 3, kind: output, shape index: {2}]
  %4 = xla_tuple %s1, %s2, %s3
  %s5 = sld [smem:[#allocation0]]
  $region34: #{tpu_custom_call.1} parent=0
    _
  %s7 = ssub.s32 1, %s5
  %s8 = scalar_select 0, %s7, %s5
  $region1: #{tpu_custom_call.1} parent=0
    #allocation2 [shape = 'u8[1024]{0}', space=vmem, size = 0x400, scoped, tag = 'input window, operand 0, single buffered']
    #allocation3 [shape = 's32[1]{0}', space=sflag, size = 0x4, scoped, tag = 'scoped memory for tpu_custom_call.1']
    #allocation4 [shape = 's32[1]{0}', space=sflag, size = 0x4, scoped, tag = 'scoped memory for tpu_custom_call.1']
    #allocation5 [shape = 'u8[1024]{0}', space=vmem, size = 0x400, scoped, tag = 'output window, operand 0, single buffered']
    %9 = vsyncpa [#allocation3], 0
    %10 = vsyncpa [#allocation4], 0
    // Predicated region
    $region2: #{tpu_custom_call.1} parent=1 // pred_check
      _
    $region3: #{tpu_custom_call.1} parent=1 // pred_check_branch
      %12 = sbr.rel (0) target = $region5
    $region4: #{tpu_custom_call.1} parent=1 // pred_region
      %s14 = ssub.s32 32, 32
      %15 = vsyncadd [#allocation3], %s14
      %s17 = sshll.u32 [#allocation2], 4
      %s18 = int_to_ptr.vmem [resolvable:$true] %s17
      %20 = dma.hbm_to_vmem [thread:$0]  %s0, 32, %s18, [#allocation3]
    $region5: #{tpu_custom_call.1} parent=1 // pred_fallthru
      _
    // Predicated region
    $region6: #{tpu_custom_call.1} parent=1 // pred_check
      _
    $region7: #{tpu_custom_call.1} parent=1 // pred_check_branch
      %22 = sbr.rel (0) target = $region9
    $region8: #{tpu_custom_call.1} parent=1 // pred_region
      %23 = dma.done [#allocation3], 32
    $region9: #{tpu_custom_call.1} parent=1 // pred_fallthru
      _
    %v24 = vld [vmem:[#allocation2] sm:$0x3]
    %vm25 = vcmask 123904
    %v26 = vsel %vm25, %v24, -inf
    %27 = vmax.xlane.f32.xlu0 %v26
    %v28 = vpop.xlane.xlu0 %27
    %v29 = vsub.f32 %v24, %v28
    %v30 = vmul.f32 %v29, 1.442695
    %v31 = vpow.pop %v30
    %v32 = vsel %vm25, %v31, 0.0
    %33 = vadd.xlane.f32.xlu0 %v32
    %v34 = vpop.xlane.xlu0 %33
    %v35 = vlog2.pop %v34
    %v36 = vmul.f32 %v35, 0.6931472
    %v37 = vsub.f32 %v29, %v36
    %38 = vst.msk [vmem:[#allocation5] sm:$0x3] %vm25, %v37
    %v39 = vsub.f32 0.0, %v36
    %vm40 = vcmask 1024
    %41 = vst.msk [vmem:[%s2] sm:$0x3] %vm40, %v39
    %v42 = vlaneseq
    %v43 = vand.u32 %v42, 127
    %vm44 = vcmp.eq.f32.partialorder %v24, %v28
    %v45 = vsel %vm44, %v43, 16
    %v46 = vsel %vm25, %v45, 2147483647
    %v47 = vand.u32 %v46, 65535
    %v48 = vshra.s32 %v46, 16
    %v49 = vcvt.s32.f32 %v47
    %v50 = vcvt.s32.f32 %v48
    %51 = vmin.xlane.f32.xlu0 %v50
    %v52 = vpop.xlane.xlu0 %51
    %vm53 = vcmp.eq.f32.partialorder %v50, %v52
    %v54 = vsel %vm53, %v49, inf
    %55 = vmin.xlane.f32.xlu0 %v54
    %v56 = vpop.xlane.xlu0 %55
    %v57 = vcvt.f32.s32 %v56
    %v58 = vcvt.f32.s32 %v52
    %v59 = vshll.u32 %v58, 16
    %v60 = vadd.s32 %v59, %v57
    %61 = vst.msk [vmem:[%s3] sm:$0x3] %vm40, %v60
    // Predicated region
    $region10: #{tpu_custom_call.1} parent=1 // pred_check
      _
    $region11: #{tpu_custom_call.1} parent=1 // pred_check_branch
      %63 = sbr.rel (0) target = $region13
    $region12: #{tpu_custom_call.1} parent=1 // pred_region
      %s65 = ssub.s32 32, 32
      %66 = vsyncadd [#allocation4], %s65
      %s68 = sshll.u32 [#allocation5], 4
      %s69 = int_to_ptr.vmem [resolvable:$true] %s68
      %71 = dma.vmem_to_hbm [thread:$0]  %s69, 32, %s1, [#allocation4]
    $region13: #{tpu_custom_call.1} parent=1 // pred_fallthru
      _
    // Predicated region
    $region14: #{tpu_custom_call.1} parent=1 // pred_check
      _
    $region15: #{tpu_custom_call.1} parent=1 // pred_check_branch
      %73 = sbr.rel (0) target = $region17
    $region16: #{tpu_custom_call.1} parent=1 // pred_region
      _
    $region17: #{tpu_custom_call.1} parent=1 // pred_fallthru
      _
    // Predicated region
    $region18: #{tpu_custom_call.1} parent=1 // pred_check
      _
    $region19: #{tpu_custom_call.1} parent=1 // pred_check_branch
      %75 = sbr.rel (0) target = $region21
    $region20: #{tpu_custom_call.1} parent=1 // pred_region
      _
    $region21: #{tpu_custom_call.1} parent=1 // pred_fallthru
      _
    // Predicated region
    $region22: #{tpu_custom_call.1} parent=1 // pred_check
      _
    $region23: #{tpu_custom_call.1} parent=1 // pred_check_branch
      %77 = sbr.rel (0) target = $region25
    $region24: #{tpu_custom_call.1} parent=1 // pred_region
      %78 = dma.done [#allocation4], 32
    $region25: #{tpu_custom_call.1} parent=1 // pred_fallthru
      _
    // Predicated region
    $region26: #{tpu_custom_call.1} parent=1 // pred_check
      _
    $region27: #{tpu_custom_call.1} parent=1 // pred_check_branch
      %80 = sbr.rel (0) target = $region29
    $region28: #{tpu_custom_call.1} parent=1 // pred_region
      _
    $region29: #{tpu_custom_call.1} parent=1 // pred_fallthru
      _
    // Predicated region
    $region30: #{tpu_custom_call.1} parent=1 // pred_check
      _
    $region31: #{tpu_custom_call.1} parent=1 // pred_check_branch
      %82 = sbr.rel (0) target = $region33
    $region32: #{tpu_custom_call.1} parent=1 // pred_region
      _
    $region33: #{tpu_custom_call.1} parent=1 // pred_fallthru
      _
    %83 = vsyncpa [#allocation3], 1
    %84 = vsyncpa [#allocation4], 1

</llo_original>
